<compile_context>
chip_gen: v5e
topology: v5e:2x2
jax: 0.10.0
libtpu: 0.0.40
codegen_flags: <defaults>
</compile_context>

<pallas_src>
import jax
import jax.numpy as jnp
import numpy as np
from jax.experimental import pallas as pl
from jax.experimental.pallas import tpu as pltpu


@jax.jit
def sgnn_forward_pallas(X, A_hat, W1t, W2t, nodes, D):
    f32 = jnp.float32
    N = X.shape[0]
    H1 = W1t.shape[1]
    H2 = W2t.shape[1]
    B = nodes.shape[0]
    Hmax = max(H1, H2)

    # --- Pack inputs: 6 tiny DMAs -> 2 pipelined VMEM DMAs + 1 scalar-prefetch SMEM copy.
    xad = jnp.stack([X.astype(f32), A_hat.astype(f32), D.astype(f32)], axis=0)   # [3, N, N]
    w1p = jnp.pad(W1t.astype(f32), ((0, 0), (0, Hmax - H1)))                     # [N,  Hmax]
    w2p = jnp.pad(W2t.astype(f32), ((0, 0), (0, Hmax - H2)))                     # [H1, Hmax]
    w_packed = jnp.concatenate([w1p, w2p], axis=0)                               # [N+H1, Hmax]
    nodes_i32 = nodes.astype(jnp.int32).reshape(B)

    def kernel(nodes_ref, xad_ref, w_ref, out_ref):
        # --- Unpack (static slices on the refs / leading-dim indices -> no lane shifts
        #     on the encoder operands).
        x = xad_ref[0]                           # [N, N]
        a = xad_ref[1]                           # [N, N]  (A_hat = A + I)
        d = xad_ref[2]                           # [N, N]
        w1 = w_ref[0:N, 0:H1]                    # [N, H1]
        w2 = w_ref[N:N + H1, 0:H2]               # [H1, H2]

        # --- One-hot selector built on the VPU from SMEM node ids (off the MXU chain).
        iota_row = jax.lax.broadcasted_iota(jnp.int32, (1, N), 1)
        gsel = jnp.concatenate(
            [(iota_row == nodes_ref[b]).astype(f32) for b in range(B)], axis=0)   # [B, N]

        # --- Merged off-chain selector matmul (shared LHS gsel): one MXU pass instead of two.
        ad = jnp.concatenate([a, d], axis=1)                                      # [N, 2N]
        sel = jnp.dot(gsel, ad, preferred_element_type=f32)                       # [B, 2N]
        a_sel = sel[:, 0:N]                                                       # A_hat[nodes]
        d_rows = sel[:, N:2 * N]                                                  # D[nodes]

        # --- Off-chain halves of the fused tail matmul (prebuilt early).
        zeros_h = jnp.zeros((B, H2), f32)
        lhs_tail = jnp.concatenate([zeros_h, d_rows], axis=1)                     # [B, H2+N]
        rhs_tail = jnp.concatenate([zeros_h, -gsel], axis=1)                      # [B, H2+N]

        # --- Encoder: critical chain of dependent MXU hops.
        h1 = jnp.maximum(jnp.dot(x, w1, preferred_element_type=f32), 0.0)         # [N, H1]
        agg1 = jnp.dot(a, h1, preferred_element_type=f32)                         # [N, H1]
        h2 = jnp.maximum(jnp.dot(agg1, w2, preferred_element_type=f32), 0.0)      # [N, H2]
        rep_sel = jnp.dot(a_sel, h2, preferred_element_type=f32)                  # [B, H2]

        # --- Fused (s - dsel): [rep_sel | d_rows] . [rep_sel | -gsel]^T (contract last dims).
        #     Only the zero lane-pad of rep_sel + two VPU adds are on the critical path.
        rep_pad = jnp.concatenate([rep_sel, jnp.zeros((B, N), f32)], axis=1)      # [B, H2+N]
        lhs = rep_pad + lhs_tail
        rhs = rep_pad + rhs_tail
        diff = jax.lax.dot_general(lhs, rhs, (((1,), (1,)), ((), ())),
                                   preferred_element_type=f32)                    # [B, B]

        # Scalar L1 loss straight to the SMEM output (scalar path).
        out_ref[0, 0] = jnp.sum(jnp.abs(diff))

    flops = 2 * (B * N * (2 * N)        # gsel @ [A_hat | D]
                 + N * N * H1           # X @ W1t
                 + N * N * H1           # A_hat @ H1
                 + N * H1 * H2          # agg1 @ W2t
                 + B * N * H2           # A_sel @ H2
                 + B * (H2 + N) * B)    # fused Gram / Dsel tail
    bytes_accessed = 4 * (3 * N * N + (N + H1) * Hmax + B + 1)

    grid_spec = pltpu.PrefetchScalarGridSpec(
        num_scalar_prefetch=1,
        grid=(1,),
        in_specs=[pl.BlockSpec(memory_space=pltpu.MemorySpace.VMEM),
                  pl.BlockSpec(memory_space=pltpu.MemorySpace.VMEM)],
        out_specs=pl.BlockSpec(memory_space=pltpu.MemorySpace.SMEM),
    )
    out = pl.pallas_call(
        kernel,
        out_shape=jax.ShapeDtypeStruct((1, 1), jnp.float32),
        grid_spec=grid_spec,
        compiler_params=pltpu.CompilerParams(dimension_semantics=("arbitrary",)),
        cost_estimate=pl.CostEstimate(
            flops=flops, transcendentals=0, bytes_accessed=bytes_accessed),
    )(nodes_i32, xad, w_packed)
    # torch module returns a FloatTensor of shape [1]
    return out.reshape(1)


def sgnn_forward_ref(X, A_hat, W1t, W2t, nodes, D):
    hp = jax.lax.Precision.HIGHEST   # f32-HIGHEST reference (per review correctness note)
    h1 = jnp.maximum(jnp.dot(X, W1t, precision=hp), 0.0)
    h2 = jnp.maximum(jnp.dot(jnp.dot(A_hat, h1, precision=hp), W2t, precision=hp), 0.0)
    rep = jnp.dot(A_hat, h2, precision=hp)
    rep_sel = rep[nodes]
    s = jnp.dot(rep_sel, rep_sel.T, precision=hp)
    dsel = D[nodes][:, nodes]
    return jnp.sum(jnp.abs(s - dsel)).reshape(1)


def xavier_uniform(key, out_dim, in_dim):
    # matches torch.nn.init.xavier_uniform_ on a [out, in] Linear weight
    bound = float(np.sqrt(6.0 / (in_dim + out_dim)))
    return jax.random.uniform(key, (out_dim, in_dim), jnp.float32, -bound, bound)


if __name__ == "__main__":
    # Small, deterministic problem: N=16 nodes, n_h1=32, n_h2=32, batch of 8 nodes, act='relu'.
    N, H1, H2, B = 16, 32, 32, 8
    key = jax.random.PRNGKey(0)
    k_x, k_d, k_w1, k_w2, k_adj, k_nodes = jax.random.split(key, 6)

    # Square feature matrix (f1 input dim == X.shape[0] in the torch module).
    X = jax.random.normal(k_x, (N, N), jnp.float32)

    # Deterministic undirected graph: ring + random chords; A_hat = A + I (closed 1-hop nbhd).
    A = np.zeros((N, N), np.float32)
    for i in range(N):
        A[i, (i + 1) % N] = 1.0
        A[(i + 1) % N, i] = 1.0
    chords = jax.random.randint(k_adj, (6, 2), 0, N)
    for a, b in np.asarray(chords):
        if a != b:
            A[a, b] = 1.0
            A[b, a] = 1.0
    A_hat = jnp.asarray(A + np.eye(N, dtype=np.float32))

    # Target pairwise distance matrix D (symmetric, zero diagonal).
    Draw = jax.random.uniform(k_d, (N, N), jnp.float32)
    D = (Draw + Draw.T) * 0.5
    D = D - jnp.diag(jnp.diag(D))

    # Linear weights (bias=False), xavier_uniform like the torch init; kept transposed [in, out].
    W1 = xavier_uniform(k_w1, H1, N)    # f1.weight  [h1, N]
    W2 = xavier_uniform(k_w2, H2, H1)   # f2.weight  [h2, h1]
    W1t = W1.T
    W2t = W2.T

    # "data": batch of node indices.
    nodes = jax.random.permutation(k_nodes, N)[:B]

    L = sgnn_forward_pallas(X, A_hat, W1t, W2t, nodes, D)
    jax.block_until_ready(L)

    L_ref = sgnn_forward_ref(X, A_hat, W1t, W2t, nodes, D)
    np.testing.assert_allclose(np.asarray(L), np.asarray(L_ref), rtol=1e-4, atol=1e-3)

    print("KERNEL_OK")
</pallas_src>

<mosaic_0001>
module attributes {stable_mosaic.version = 11 : i64} {
  func.func @kernel(%arg0: i32, %arg1: memref<8xi32, #tpu.memory_space<smem>>, %arg2: memref<3x16x16xf32, #tpu.memory_space<vmem>>, %arg3: memref<48x32xf32, #tpu.memory_space<vmem>>, %arg4: memref<1x1xf32, #tpu.memory_space<smem>>) attributes {dimension_semantics = [#tpu.dimension_semantics<arbitrary>], iteration_bounds = array<i64: 1>, scalar_prefetch = 1 : i64, scratch_operands = 0 : i64, tpu.core_type = #tpu.core_type<tc>, window_params = [{pipeline_mode = #tpu.pipeline_mode<synchronous>, transform_indices = @transform_0, window_bounds = array<i64: 3, 16, 16>}, {pipeline_mode = #tpu.pipeline_mode<synchronous>, transform_indices = @transform_1, window_bounds = array<i64: 48, 32>}, {transform_indices = @transform_2, window_bounds = array<i64: 1, 1>}]} {
    %c0 = arith.constant 0 : index
    %c0_0 = arith.constant 0 : index
    %c0_1 = arith.constant 0 : index
    %0 = vector.load %arg2[%c0, %c0_0, %c0_1] : memref<3x16x16xf32, #tpu.memory_space<vmem>>, vector<1x16x16xf32>
    %1 = vector.shape_cast %0 : vector<1x16x16xf32> to vector<16x16xf32>
    %c1 = arith.constant 1 : index
    %c0_2 = arith.constant 0 : index
    %c0_3 = arith.constant 0 : index
    %2 = vector.load %arg2[%c1, %c0_2, %c0_3] : memref<3x16x16xf32, #tpu.memory_space<vmem>>, vector<1x16x16xf32>
    %3 = vector.shape_cast %2 : vector<1x16x16xf32> to vector<16x16xf32>
    %c2 = arith.constant 2 : index
    %c0_4 = arith.constant 0 : index
    %c0_5 = arith.constant 0 : index
    %4 = vector.load %arg2[%c2, %c0_4, %c0_5] : memref<3x16x16xf32, #tpu.memory_space<vmem>>, vector<1x16x16xf32>
    %5 = vector.shape_cast %4 : vector<1x16x16xf32> to vector<16x16xf32>
    %c0_6 = arith.constant 0 : index
    %c0_7 = arith.constant 0 : index
    %6 = vector.load %arg3[%c0_6, %c0_7] : memref<48x32xf32, #tpu.memory_space<vmem>>, vector<16x32xf32>
    %c16 = arith.constant 16 : index
    %c0_8 = arith.constant 0 : index
    %7 = vector.load %arg3[%c16, %c0_8] : memref<48x32xf32, #tpu.memory_space<vmem>>, vector<32x32xf32>
    %8 = tpu.iota {dimensions = array<i32: 1>} : vector<1x16xi32>
    %c0_9 = arith.constant 0 : index
    %9 = memref.load %arg1[%c0_9] : memref<8xi32, #tpu.memory_space<smem>>
    %10 = vector.broadcast %9 : i32 to vector<1x16xi32>
    %11 = arith.cmpi eq, %8, %10 : vector<1x16xi32>
    %12 = arith.extui %11 : vector<1x16xi1> to vector<1x16xi32>
    %13 = arith.sitofp %12 : vector<1x16xi32> to vector<1x16xf32>
    %c1_10 = arith.constant 1 : index
    %14 = memref.load %arg1[%c1_10] : memref<8xi32, #tpu.memory_space<smem>>
    %15 = vector.broadcast %14 : i32 to vector<1x16xi32>
    %16 = arith.cmpi eq, %8, %15 : vector<1x16xi32>
    %17 = arith.extui %16 : vector<1x16xi1> to vector<1x16xi32>
    %18 = arith.sitofp %17 : vector<1x16xi32> to vector<1x16xf32>
    %c2_11 = arith.constant 2 : index
    %19 = memref.load %arg1[%c2_11] : memref<8xi32, #tpu.memory_space<smem>>
    %20 = vector.broadcast %19 : i32 to vector<1x16xi32>
    %21 = arith.cmpi eq, %8, %20 : vector<1x16xi32>
    %22 = arith.extui %21 : vector<1x16xi1> to vector<1x16xi32>
    %23 = arith.sitofp %22 : vector<1x16xi32> to vector<1x16xf32>
    %c3 = arith.constant 3 : index
    %24 = memref.load %arg1[%c3] : memref<8xi32, #tpu.memory_space<smem>>
    %25 = vector.broadcast %24 : i32 to vector<1x16xi32>
    %26 = arith.cmpi eq, %8, %25 : vector<1x16xi32>
    %27 = arith.extui %26 : vector<1x16xi1> to vector<1x16xi32>
    %28 = arith.sitofp %27 : vector<1x16xi32> to vector<1x16xf32>
    %c4 = arith.constant 4 : index
    %29 = memref.load %arg1[%c4] : memref<8xi32, #tpu.memory_space<smem>>
    %30 = vector.broadcast %29 : i32 to vector<1x16xi32>
    %31 = arith.cmpi eq, %8, %30 : vector<1x16xi32>
    %32 = arith.extui %31 : vector<1x16xi1> to vector<1x16xi32>
    %33 = arith.sitofp %32 : vector<1x16xi32> to vector<1x16xf32>
    %c5 = arith.constant 5 : index
    %34 = memref.load %arg1[%c5] : memref<8xi32, #tpu.memory_space<smem>>
    %35 = vector.broadcast %34 : i32 to vector<1x16xi32>
    %36 = arith.cmpi eq, %8, %35 : vector<1x16xi32>
    %37 = arith.extui %36 : vector<1x16xi1> to vector<1x16xi32>
    %38 = arith.sitofp %37 : vector<1x16xi32> to vector<1x16xf32>
    %c6 = arith.constant 6 : index
    %39 = memref.load %arg1[%c6] : memref<8xi32, #tpu.memory_space<smem>>
    %40 = vector.broadcast %39 : i32 to vector<1x16xi32>
    %41 = arith.cmpi eq, %8, %40 : vector<1x16xi32>
    %42 = arith.extui %41 : vector<1x16xi1> to vector<1x16xi32>
    %43 = arith.sitofp %42 : vector<1x16xi32> to vector<1x16xf32>
    %c7 = arith.constant 7 : index
    %44 = memref.load %arg1[%c7] : memref<8xi32, #tpu.memory_space<smem>>
    %45 = vector.broadcast %44 : i32 to vector<1x16xi32>
    %46 = arith.cmpi eq, %8, %45 : vector<1x16xi32>
    %47 = arith.extui %46 : vector<1x16xi1> to vector<1x16xi32>
    %48 = arith.sitofp %47 : vector<1x16xi32> to vector<1x16xf32>
    %49 = tpu.concatenate %13, %18, %23, %28, %33, %38, %43, %48 in 0 : vector<1x16xf32>, vector<1x16xf32>, vector<1x16xf32>, vector<1x16xf32>, vector<1x16xf32>, vector<1x16xf32>, vector<1x16xf32>, vector<1x16xf32> -> vector<8x16xf32>
    %50 = tpu.concatenate %3, %5 in 1 : vector<16x16xf32>, vector<16x16xf32> -> vector<16x32xf32>
    %cst = arith.constant dense<0.000000e+00> : vector<8x32xf32>
    %51 = tpu.matmul %49, %50, %cst {dimension_numbers = #tpu.dot_dimension_numbers<[1], [0], [0], [1], [0, 0, 1, 1], [], []>} : vector<8x16xf32>, vector<16x32xf32>, vector<8x32xf32> -> vector<8x32xf32>
    %52 = vector.extract_strided_slice %51 {offsets = [0, 0], sizes = [8, 16], strides = [1, 1]} : vector<8x32xf32> to vector<8x16xf32>
    %53 = vector.extract_strided_slice %51 {offsets = [0, 16], sizes = [8, 16], strides = [1, 1]} : vector<8x32xf32> to vector<8x16xf32>
    %cst_12 = arith.constant 0.000000e+00 : f32
    %54 = vector.broadcast %cst_12 : f32 to vector<8x32xf32>
    %55 = tpu.concatenate %54, %53 in 1 : vector<8x32xf32>, vector<8x16xf32> -> vector<8x48xf32>
    %cst_13 = arith.constant 0.000000e+00 : f32
    %56 = vector.broadcast %cst_13 : f32 to vector<8x16xf32>
    %57 = arith.subf %56, %49 : vector<8x16xf32>
    %58 = tpu.concatenate %54, %57 in 1 : vector<8x32xf32>, vector<8x16xf32> -> vector<8x48xf32>
    %cst_14 = arith.constant dense<0.000000e+00> : vector<16x32xf32>
    %59 = tpu.matmul %1, %6, %cst_14 {dimension_numbers = #tpu.dot_dimension_numbers<[1], [0], [0], [1], [0, 0, 1, 1], [], []>} : vector<16x16xf32>, vector<16x32xf32>, vector<16x32xf32> -> vector<16x32xf32>
    %cst_15 = arith.constant 0.000000e+00 : f32
    %60 = vector.broadcast %cst_15 : f32 to vector<16x32xf32>
    %61 = arith.maximumf %59, %60 : vector<16x32xf32>
    %cst_16 = arith.constant dense<0.000000e+00> : vector<16x32xf32>
    %62 = tpu.matmul %3, %61, %cst_16 {dimension_numbers = #tpu.dot_dimension_numbers<[1], [0], [0], [1], [0, 0, 1, 1], [], []>} : vector<16x16xf32>, vector<16x32xf32>, vector<16x32xf32> -> vector<16x32xf32>
    %cst_17 = arith.constant dense<0.000000e+00> : vector<16x32xf32>
    %63 = tpu.matmul %62, %7, %cst_17 {dimension_numbers = #tpu.dot_dimension_numbers<[1], [0], [0], [1], [0, 0, 1, 1], [], []>} : vector<16x32xf32>, vector<32x32xf32>, vector<16x32xf32> -> vector<16x32xf32>
    %cst_18 = arith.constant 0.000000e+00 : f32
    %64 = vector.broadcast %cst_18 : f32 to vector<16x32xf32>
    %65 = arith.maximumf %63, %64 : vector<16x32xf32>
    %cst_19 = arith.constant dense<0.000000e+00> : vector<8x32xf32>
    %66 = tpu.matmul %52, %65, %cst_19 {dimension_numbers = #tpu.dot_dimension_numbers<[1], [0], [0], [1], [0, 0, 1, 1], [], []>} : vector<8x16xf32>, vector<16x32xf32>, vector<8x32xf32> -> vector<8x32xf32>
    %cst_20 = arith.constant 0.000000e+00 : f32
    %67 = vector.broadcast %cst_20 : f32 to vector<8x16xf32>
    %68 = tpu.concatenate %66, %67 in 1 : vector<8x32xf32>, vector<8x16xf32> -> vector<8x48xf32>
    %69 = arith.addf %68, %55 : vector<8x48xf32>
    %70 = arith.addf %68, %58 : vector<8x48xf32>
    %cst_21 = arith.constant dense<0.000000e+00> : vector<8x8xf32>
    %71 = tpu.matmul %69, %70, %cst_21 {dimension_numbers = #tpu.dot_dimension_numbers<[1], [1], [0], [0], [0, 0, 1, 0], [], []>} : vector<8x48xf32>, vector<8x48xf32>, vector<8x8xf32> -> vector<8x8xf32>
    %72 = math.absf %71 : vector<8x8xf32>
    %73 = vector.shape_cast %72 : vector<8x8xf32> to vector<1x8x8xf32>
    %cst_22 = arith.constant dense<0.000000e+00> : vector<1xf32>
    %74 = vector.multi_reduction <add>, %73, %cst_22 [1, 2] : vector<1x8x8xf32> to vector<1xf32>
    %75 = vector.shape_cast %74 : vector<1xf32> to vector<1x1x1xf32>
    %76 = vector.extract %75[0, 0, 0] : f32 from vector<1x1x1xf32>
    %c0_23 = arith.constant 0 : index
    %c0_24 = arith.constant 0 : index
    %77 = memref.load %arg4[%c0_23, %c0_24] : memref<1x1xf32, #tpu.memory_space<smem>>
    memref.store %76, %arg4[%c0_23, %c0_24] : memref<1x1xf32, #tpu.memory_space<smem>>
    return
  }
  func.func @transform_0(%arg0: i32, %arg1: memref<8xi32, #tpu.memory_space<smem>>) -> (i32, i32, i32) {
    %c0_i32 = arith.constant 0 : i32
    %c0_i32_0 = arith.constant 0 : i32
    %c0_i32_1 = arith.constant 0 : i32
    %c0_i32_2 = arith.constant 0 : i32
    return %c0_i32, %c0_i32_0, %c0_i32_1 : i32, i32, i32
  }
  func.func @transform_1(%arg0: i32, %arg1: memref<8xi32, #tpu.memory_space<smem>>) -> (i32, i32) {
    %c0_i32 = arith.constant 0 : i32
    %c0_i32_0 = arith.constant 0 : i32
    %c0_i32_1 = arith.constant 0 : i32
    return %c0_i32, %c0_i32_0 : i32, i32
  }
  func.func @transform_2(%arg0: i32, %arg1: memref<8xi32, #tpu.memory_space<smem>>) -> (i32, i32) {
    %c0_i32 = arith.constant 0 : i32
    %c0_i32_0 = arith.constant 0 : i32
    %c0_i32_1 = arith.constant 0 : i32
    return %c0_i32, %c0_i32_0 : i32, i32
  }
}

</mosaic_0001>

<llo_original>
// kernel: sgnn_forward_pallas.1
$region0: #{sgnn_forward_pallas.1}
  #allocation0 [shape = 'u32[]', space=smem, size = 0x4, offset = 0x4, fixed_abs, tag = 'smem constant byte address 0x4 - core index']
  #allocation1 [shape = 'u32[72,128]{1,0:T(1,128)}', space=vmem, size = 0x9000, scoped, tag = 'internal scratch']
  #allocation2 [shape = 's32[1]{0}', space=sflag, size = 0x4, scoped, tag = 'scoped memory for sgnn_forward_pallas.1']
  #allocation3 [shape = 'u8[512]{0}', space=smem, size = 0x200, scoped, tag = 'prefetched SMEM operand 0']
  %s0 = inlined_call_operand.vmem [shape: s32[8], index: 0, kind: input, shape index: {}]
  %s1 = inlined_call_operand.vmem [shape: f32[3,16,16], index: 1, kind: input, shape index: {}]
  %s2 = inlined_call_operand.vmem [shape: f32[48,32], index: 2, kind: input, shape index: {}]
  %s3 = inlined_call_operand.hbm [shape: f32[1,1], index: 3, kind: output, shape index: {}]
  %s4 = sld [smem:[#allocation0]]
  $region18: #{sgnn_forward_pallas.1} parent=0
    _
  %s6 = ssub.s32 1, %s4
  %s7 = scalar_select 0, %s6, %s4
  %s9 = sshll.u32 %s0, 4
  %s10 = int_to_ptr.vmem [resolvable:$true] %s9
  %12 = dma.vmem_to_smem %s10, 16, [#allocation3], [#allocation2]
  %14 = dma.done [#allocation2], 16
  %15 = sfence
  $region1: #{sgnn_forward_pallas.1} parent=0
    #allocation4 [shape = 'u8[512]{0}', space=smem, size = 0x200, scoped, tag = 'output window, operand 0, single buffered']
    #allocation5 [shape = 's32[1]{0}', space=sflag, size = 0x4, scoped, tag = 'scoped memory for sgnn_forward_pallas.1']
    %16 = vsyncpa [#allocation5], 0
    // Predicated region
    $region2: #{sgnn_forward_pallas.1} parent=1 // pred_check
      _
    $region3: #{sgnn_forward_pallas.1} parent=1 // pred_check_branch
      %18 = sbr.rel (0) target = $region5
    $region4: #{sgnn_forward_pallas.1} parent=1 // pred_region
      _
    $region5: #{sgnn_forward_pallas.1} parent=1 // pred_fallthru
      _
    // Predicated region
    $region6: #{sgnn_forward_pallas.1} parent=1 // pred_check
      _
    $region7: #{sgnn_forward_pallas.1} parent=1 // pred_check_branch
      %20 = sbr.rel (0) target = $region9
    $region8: #{sgnn_forward_pallas.1} parent=1 // pred_region
      _
    $region9: #{sgnn_forward_pallas.1} parent=1 // pred_fallthru
      _
    %v21 = vld [vmem:[%s1] sm:$0xff]
    %v22 = vld [vmem:[%s1 + $0x8] sm:$0xff]
    %s23 = scalar_lea.vmem %s1, 16
    %v24 = vld [vmem:[%s23] sm:$0xff]
    %v25 = vld [vmem:[%s23 + $0x8] sm:$0xff]
    %s26 = scalar_lea.vmem %s1, 32
    %v27 = vld [vmem:[%s26] sm:$0xff]
    %v28 = vld [vmem:[%s26 + $0x8] sm:$0xff]
    %v29 = vld [vmem:[%s2] sm:$0xff]
    %v30 = vld [vmem:[%s2 + $0x8] sm:$0xff]
    %v31 = vld [vmem:[%s2 + $0x10] sm:$0xff]
    %v32 = vld [vmem:[%s2 + $0x18] sm:$0xff]
    %v33 = vld [vmem:[%s2 + $0x20] sm:$0xff]
    %v34 = vld [vmem:[%s2 + $0x28] sm:$0xff]
    %v35 = vlaneseq
    %v36 = vand.u32 %v35, 127
    %s37 = sld [smem:[#allocation3]]
    %v38 = vstv %s37
    %vm39 = vcmp.eq.s32.totalorder %v36, %v38
    %v40 = vsel %vm39, 1, 0
    %v41 = vcvt.s32.f32 %v40
    %s42 = sld [smem:[#allocation3 + $0x1]]
    %v43 = vstv %s42
    %vm44 = vcmp.eq.s32.totalorder %v36, %v43
    %v45 = vsel %vm44, 1, 0
    %v46 = vcvt.s32.f32 %v45
    %s47 = sld [smem:[#allocation3 + $0x2]]
    %v48 = vstv %s47
    %vm49 = vcmp.eq.s32.totalorder %v36, %v48
    %v50 = vsel %vm49, 1, 0
    %v51 = vcvt.s32.f32 %v50
    %s52 = sld [smem:[#allocation3 + $0x3]]
    %v53 = vstv %s52
    %vm54 = vcmp.eq.s32.totalorder %v36, %v53
    %v55 = vsel %vm54, 1, 0
    %v56 = vcvt.s32.f32 %v55
    %s57 = sld [smem:[#allocation3 + $0x4]]
    %v58 = vstv %s57
    %vm59 = vcmp.eq.s32.totalorder %v36, %v58
    %v60 = vsel %vm59, 1, 0
    %v61 = vcvt.s32.f32 %v60
    %s62 = sld [smem:[#allocation3 + $0x5]]
    %v63 = vstv %s62
    %vm64 = vcmp.eq.s32.totalorder %v36, %v63
    %v65 = vsel %vm64, 1, 0
    %v66 = vcvt.s32.f32 %v65
    %s67 = sld [smem:[#allocation3 + $0x6]]
    %v68 = vstv %s67
    %vm69 = vcmp.eq.s32.totalorder %v36, %v68
    %v70 = vsel %vm69, 1, 0
    %v71 = vcvt.s32.f32 %v70
    %s72 = sld [smem:[#allocation3 + $0x7]]
    %v73 = vstv %s72
    %vm74 = vcmp.eq.s32.totalorder %v36, %v73
    %v75 = vsel %vm74, 1, 0
    %v76 = vcvt.s32.f32 %v75
    %vm77 = vcmask 1040384
    %v78 = vsel %vm77, %v41, %v46
    %vm79 = vcmask 1041408
    %v80 = vsel %vm79, %v78, %v51
    %vm81 = vcmask 1042432
    %v82 = vsel %vm81, %v80, %v56
    %vm83 = vcmask 1043456
    %v84 = vsel %vm83, %v82, %v61
    %vm85 = vcmask 1044480
    %v86 = vsel %vm85, %v84, %v66
    %vm87 = vcmask 1045504
    %v88 = vsel %vm87, %v86, %v71
    %vm89 = vcmask 1046528
    %v90 = vsel %vm89, %v88, %v76
    %93 = vrot.lane.b32.xlu0 %v27, 16
    %v94 = vpop.permute.xlu0 %93
    %95 = vrot.lane.b32.xlu0 %v28, 16
    %v96 = vpop.permute.xlu0 %95
    %vm99 = vcmask 130048
    %v100 = vsel %vm99, %v24, %v94
    %v101 = vsel %vm99, %v25, %v96
    %v103 = vsel %vm99, %v90, 0
    %105 = vmatpush.msra.mxu0 0.0
    %106 = vmatpush.msra.mxu0 0.0
    %107 = vmatpush.msra.mxu0 0.0
    %108 = vmatpush.msra.mxu0 0.0
    %109 = vmatpush.msra.mxu0 0.0
    %110 = vmatpush.msra.mxu0 0.0
    %111 = vmatpush.msra.mxu0 0.0
    %112 = vmatpush.msra.mxu0 0.0
    %113 = vmatpush.msra.mxu0 0.0
    %114 = vmatpush.msra.mxu0 0.0
    %115 = vmatpush.msra.mxu0 0.0
    %116 = vmatpush.msra.mxu0 0.0
    %117 = vmatpush.msra.mxu0 0.0
    %118 = vmatpush.msra.mxu0 0.0
    %119 = vmatpush.msra.mxu0 %v101
    %120 = vmatpush.msra.mxu0 %v100
    %121 = vmatmul.f32.gmra.mxu0 %v103
    %v122 = vpop.f32.mrf.mxu0
    %v123 = vadd.f32 0.0, %v122
    %124 = vdwg.mxu0
    %126 = vrot.lane.b32.xlu0 %v123, 16
    %v127 = vpop.permute.xlu0 %126
    %vm129 = vcmask 261120
    %v130 = vsel %vm129, 0.0, %v127
    %v131 = vsub.f32 0.0, %v90
    %133 = vrot.lane.b32.xlu0 %v131, 32
    %v134 = vpop.permute.xlu0 %133
    %v136 = vsel %vm129, 0.0, %v134
    %v138 = vsel %vm99, %v21, 0
    %v141 = vsel %vm99, %v22, 0
    %143 = vmatpush.msra.mxu0 0.0
    %144 = vmatpush.msra.mxu0 0.0
    %145 = vmatpush.msra.mxu0 0.0
    %146 = vmatpush.msra.mxu0 0.0
    %147 = vmatpush.msra.mxu0 0.0
    %148 = vmatpush.msra.mxu0 0.0
    %149 = vmatpush.msra.mxu0 0.0
    %150 = vmatpush.msra.mxu0 0.0
    %151 = vmatpush.msra.mxu0 0.0
    %152 = vmatpush.msra.mxu0 0.0
    %153 = vmatpush.msra.mxu0 0.0
    %154 = vmatpush.msra.mxu0 0.0
    %155 = vmatpush.msra.mxu0 0.0
    %156 = vmatpush.msra.mxu0 0.0
    %157 = vmatpush.msra.mxu0 %v30
    %158 = vmatpush.msra.mxu0 %v29
    %159 = vmatmul.f32.gmra.mxu0 %v138
    %v160 = vpop.f32.mrf.mxu0
    %v161 = vadd.f32 0.0, %v160
    %162 = vmatmul.f32.gmra.mxu0 %v141
    %v163 = vpop.f32.mrf.mxu0
    %v164 = vadd.f32 0.0, %v163
    %165 = vdwg.mxu0
    %v166 = vmax.f32 %v161, 0.0
    %v167 = vmax.f32 %v164, 0.0
    %v169 = vsel %vm99, %v24, 0
    %v172 = vsel %vm99, %v25, 0
    %174 = vmatpush.msra.mxu0 0.0
    %175 = vmatpush.msra.mxu0 0.0
    %176 = vmatpush.msra.mxu0 0.0
    %177 = vmatpush.msra.mxu0 0.0
    %178 = vmatpush.msra.mxu0 0.0
    %179 = vmatpush.msra.mxu0 0.0
    %180 = vmatpush.msra.mxu0 0.0
    %181 = vmatpush.msra.mxu0 0.0
    %182 = vmatpush.msra.mxu0 0.0
    %183 = vmatpush.msra.mxu0 0.0
    %184 = vmatpush.msra.mxu0 0.0
    %185 = vmatpush.msra.mxu0 0.0
    %186 = vmatpush.msra.mxu0 0.0
    %187 = vmatpush.msra.mxu0 0.0
    %188 = vmatpush.msra.mxu0 %v167
    %189 = vmatpush.msra.mxu0 %v166
    %190 = vmatmul.f32.gmra.mxu0 %v169
    %v191 = vpop.f32.mrf.mxu0
    %v192 = vadd.f32 0.0, %v191
    %193 = vmatmul.f32.gmra.mxu0 %v172
    %v194 = vpop.f32.mrf.mxu0
    %v195 = vadd.f32 0.0, %v194
    %196 = vdwg.mxu0
    %v198 = vsel %vm129, %v192, 0
    %v201 = vsel %vm129, %v195, 0
    %203 = vmatpush.msra.mxu0 0.0
    %204 = vmatpush.msra.mxu0 0.0
    %205 = vmatpush.msra.mxu0 0.0
    %206 = vmatpush.msra.mxu0 0.0
    %207 = vmatpush.msra.mxu0 0.0
    %208 = vmatpush.msra.mxu0 0.0
    %209 = vmatpush.msra.mxu0 0.0
    %210 = vmatpush.msra.mxu0 0.0
    %211 = vmatpush.msra.mxu0 0.0
    %212 = vmatpush.msra.mxu0 0.0
    %213 = vmatpush.msra.mxu0 0.0
    %214 = vmatpush.msra.mxu0 0.0
    %215 = vmatpush.msra.mxu0 %v34
    %216 = vmatpush.msra.mxu0 %v33
    %217 = vmatpush.msra.mxu0 %v32
    %218 = vmatpush.msra.mxu0 %v31
    %219 = vmatmul.f32.gmra.mxu0 %v198
    %v220 = vpop.f32.mrf.mxu0
    %v221 = vadd.f32 0.0, %v220
    %222 = vmatmul.f32.gmra.mxu0 %v201
    %v223 = vpop.f32.mrf.mxu0
    %v224 = vadd.f32 0.0, %v223
    %225 = vdwg.mxu0
    %v226 = vmax.f32 %v221, 0.0
    %v227 = vmax.f32 %v224, 0.0
    %v228 = vsel %vm99, %v123, 0
    %230 = vmatpush.msra.mxu0 0.0
    %231 = vmatpush.msra.mxu0 0.0
    %232 = vmatpush.msra.mxu0 0.0
    %233 = vmatpush.msra.mxu0 0.0
    %234 = vmatpush.msra.mxu0 0.0
    %235 = vmatpush.msra.mxu0 0.0
    %236 = vmatpush.msra.mxu0 0.0
    %237 = vmatpush.msra.mxu0 0.0
    %238 = vmatpush.msra.mxu0 0.0
    %239 = vmatpush.msra.mxu0 0.0
    %240 = vmatpush.msra.mxu0 0.0
    %241 = vmatpush.msra.mxu0 0.0
    %242 = vmatpush.msra.mxu0 0.0
    %243 = vmatpush.msra.mxu0 0.0
    %244 = vmatpush.msra.mxu0 %v227
    %245 = vmatpush.msra.mxu0 %v226
    %246 = vmatmul.f32.gmra.mxu0 %v228
    %v247 = vpop.f32.mrf.mxu0
    %v248 = vadd.f32 0.0, %v247
    %249 = vdwg.mxu0
    %v250 = vsel %vm129, %v248, 0.0
    %v251 = vadd.f32 %v250, %v130
    %v252 = vadd.f32 %v250, %v136
    %vm253 = vcmask 392192
    %v255 = vsel %vm253, %v251, 0
    %v258 = vsel %vm253, %v252, 0
    %260 = vmatpush.xpose.msra.mxu0 0.0
    %261 = vmatpush.xpose.msra.mxu0 0.0
    %262 = vmatpush.xpose.msra.mxu0 0.0
    %263 = vmatpush.xpose.msra.mxu0 0.0
    %264 = vmatpush.xpose.msra.mxu0 0.0
    %265 = vmatpush.xpose.msra.mxu0 0.0
    %266 = vmatpush.xpose.msra.mxu0 0.0
    %267 = vmatpush.xpose.msra.mxu0 0.0
    %268 = vmatpush.xpose.msra.mxu0 0.0
    %269 = vmatpush.xpose.msra.mxu0 0.0
    %270 = vmatpush.xpose.msra.mxu0 0.0
    %271 = vmatpush.xpose.msra.mxu0 0.0
    %272 = vmatpush.xpose.msra.mxu0 0.0
    %273 = vmatpush.xpose.msra.mxu0 0.0
    %274 = vmatpush.xpose.msra.mxu0 0.0
    %275 = vmatpush.xpose.msra.mxu0 %v258
    %276 = vmatmul.f32.gmra.mxu0 %v255
    %v277 = vpop.f32.mrf.mxu0
    %v278 = vadd.f32 0.0, %v277
    %279 = vdwg.mxu0
    %v280 = vand.u32 2147483647, %v278
    %vm281 = vcmask 64512
    %v282 = vsel %vm281, %v280, 0.0
    %283 = vadd.xlane.f32.xlu0 %v282
    %v284 = vpop.xlane.xlu0 %283
    %v285 = vrot.slane %v284, 4
    %v286 = vadd.f32 %v284, %v285
    %v287 = vrot.slane %v286, 2
    %v288 = vadd.f32 %v286, %v287
    %v289 = vrot.slane %v288, 1
    %v290 = vadd.f32 %v288, %v289
    %s291 = vtos %v290
    %s292 = scalar_lea.smem [#allocation4], 0
    %293 = sst [smem:[%s292]] %s291
    // Predicated region
    $region10: #{sgnn_forward_pallas.1} parent=1 // pred_check
      _
    $region11: #{sgnn_forward_pallas.1} parent=1 // pred_check_branch
      %295 = sbr.rel (0) target = $region13
    $region12: #{sgnn_forward_pallas.1} parent=1 // pred_region
      %297 = vsyncadd [#allocation5], 0
      %s299 = sshll.u32 %s3, 4
      %s300 = int_to_ptr.hbm [resolvable:$true] %s299
      %302 = dma.smem_to_hbm [#allocation4], 16, %s300, [#allocation5]
    $region13: #{sgnn_forward_pallas.1} parent=1 // pred_fallthru
      _
    // Predicated region
    $region14: #{sgnn_forward_pallas.1} parent=1 // pred_check
      _
    $region15: #{sgnn_forward_pallas.1} parent=1 // pred_check_branch
      %304 = sbr.rel (0) target = $region17
    $region16: #{sgnn_forward_pallas.1} parent=1 // pred_region
      %306 = dma.done [#allocation5], 16
    $region17: #{sgnn_forward_pallas.1} parent=1 // pred_fallthru
      _
    %307 = sfence
    %308 = vsyncpa [#allocation5], 1

</llo_original>
